<compile_context>
chip_gen: v5e
topology: v5e:2x2
jax: 0.10.0
libtpu: 0.0.40
codegen_flags: <defaults>
</compile_context>

<pallas_src>
import functools

import jax
import jax.numpy as jnp
from jax import lax
from jax.experimental import pallas as pl
from jax.experimental.pallas import tpu as pltpu


# ----------------------------------------------------------------------------
# VMEM budget (generation-aware)
# ----------------------------------------------------------------------------
def _round_up(x, n):
    return ((x + n - 1) // n) * n


def _vmem_capacity_bytes():
    try:
        info = pltpu.get_tpu_info()
        cap = getattr(info, "vmem_capacity_bytes", None)
        if cap:
            return int(cap)
    except Exception:
        pass
    # Conservative fallback = v7x per-TensorCore VMEM; safe on every generation.
    return 64 << 20


_VMEM_CAP = _vmem_capacity_bytes()
# ~45 MiB tile budget on v7x (64 MiB physical), ~90 MiB on v5e/v6e (128 MiB).
_TILE_BUDGET = int(_VMEM_CAP * 0.70)


def _r8(n):
    return _round_up(max(int(n), 1), 8)


def _footprint_bytes(tm, rows_x, rows_w, rows_out, chunk):
    """Realistic VMEM use for one grid step: double-buffered f32 real/imag
    tiles (sublane dims rounded up to 8) + in-kernel temporaries + slack."""
    io_bytes = 2 * 2 * 4 * tm * (_r8(rows_x) + _r8(rows_w) + _r8(rows_out))
    tmp_bytes = 6 * _r8(chunk) * tm * 4          # acc_r/acc_i + chunk temps
    return io_bytes + tmp_bytes + (2 << 20)      # compiler scratch slack


def _choose_tile(M, rows_x, rows_w, rows_out, chunk, budget_bytes):
    """Largest lane tile (multiple of 128, not restricted to divisors of M)
    that fits the VMEM budget.  Prefers a single exact tile (no grid-step
    overhead) when the whole mode axis is <= 2048 lanes."""
    m128 = _round_up(max(M, 1), 128)
    std = [c for c in (2048, 1024, 512, 256, 128) if c < m128]
    cands = ([m128] if m128 <= 2048 else []) + std
    if not cands:
        cands = [m128]
    for tm in cands:
        if _footprint_bytes(tm, rows_x, rows_w, rows_out, chunk) <= budget_bytes:
            return tm
    # TODO(synk): also tile the row (sublane) axis when even a 128-lane tile
    # exceeds the budget (huge B*Cin / Cin*Cout); the caller raises
    # vmem_limit_bytes to the real footprint instead of silently violating it.
    return cands[-1]


# ----------------------------------------------------------------------------
# Kernel
# ----------------------------------------------------------------------------
def _spectral_mul_kernel(x_ref, w_ref, o_ref, *, B, Cin, Cout, chunk):
    """Lane-dense complex contraction over input channels.

    x_ref : (2, B*Cin,    TM)    row b*Cin + i
    w_ref : (2, Cin*Cout, TM)    row i*Cout + o
    o_ref : (2, B*Cout,   TM)    row b*Cout + o
    out_r = sum_i xr_i*wr_i - xi_i*wi_i ;  out_i = sum_i xr_i*wi_i + xi_i*wr_i
    """
    TM = x_ref.shape[-1]

    def step(b, oc0, oc_n, i, acc_r, acc_i):
        xr = x_ref[0, pl.ds(b * Cin + i, 1), :]          # (1, TM)
        xi = x_ref[1, pl.ds(b * Cin + i, 1), :]
        wr = w_ref[0, pl.ds(i * Cout + oc0, oc_n), :]    # (oc_n, TM)
        wi = w_ref[1, pl.ds(i * Cout + oc0, oc_n), :]
        acc_r = acc_r + xr * wr - xi * wi
        acc_i = acc_i + xr * wi + xi * wr
        return acc_r, acc_i

    for b in range(B):                                   # small, static
        for oc0 in range(0, Cout, chunk):                # <=8-row output chunks
            oc_n = min(chunk, Cout - oc0)
            acc_r = jnp.zeros((oc_n, TM), jnp.float32)
            acc_i = jnp.zeros((oc_n, TM), jnp.float32)
            if Cin <= 8:
                # Tiny contraction: full static unroll, all indices static.
                for i in range(Cin):
                    acc_r, acc_i = step(b, oc0, oc_n, i, acc_r, acc_i)
            else:
                # Realistic channel counts: visible loop keeps vreg pressure /
                # live ranges bounded (partial unroll for schedule overlap).
                def body(i, carry):
                    return step(b, oc0, oc_n, i, *carry)
                acc_r, acc_i = lax.fori_loop(0, Cin, body, (acc_r, acc_i),
                                             unroll=4)
            o_ref[0, pl.ds(b * Cout + oc0, oc_n), :] = acc_r
            o_ref[1, pl.ds(b * Cout + oc0, oc_n), :] = acc_i


def _spectral_mul_pallas(x_packed, w_packed, B, Cin, Cout):
    """x_packed: (2, B*Cin, M) f32,  w_packed: (2, Cin*Cout, M) f32
    -> (2, B*Cout, M) f32 (real/imag stacked on the leading axis)."""
    M = x_packed.shape[-1]
    rows_x, rows_w, rows_out = B * Cin, Cin * Cout, B * Cout
    chunk = min(8, Cout)

    tm = _choose_tile(M, rows_x, rows_w, rows_out, chunk, _TILE_BUDGET)
    Mpad = _round_up(M, tm)
    if Mpad != M:
        pad = ((0, 0), (0, 0), (0, Mpad - M))
        x_packed = jnp.pad(x_packed, pad)
        w_packed = jnp.pad(w_packed, pad)
    grid = (Mpad // tm,)

    fp = _footprint_bytes(tm, rows_x, rows_w, rows_out, chunk)
    vmem_limit = max(int(_VMEM_CAP * 0.8), fp + (4 << 20))
    vmem_limit = min(vmem_limit, _VMEM_CAP - (2 << 20))

    x_spec = pl.BlockSpec((2, rows_x, tm), lambda m: (0, 0, m))
    w_spec = pl.BlockSpec((2, rows_w, tm), lambda m: (0, 0, m))
    o_spec = pl.BlockSpec((2, rows_out, tm), lambda m: (0, 0, m))

    out = pl.pallas_call(
        functools.partial(_spectral_mul_kernel, B=B, Cin=Cin, Cout=Cout,
                          chunk=chunk),
        out_shape=jax.ShapeDtypeStruct((2, rows_out, Mpad), jnp.float32),
        grid_spec=pltpu.PrefetchScalarGridSpec(
            num_scalar_prefetch=0,
            grid=grid,
            in_specs=[x_spec, w_spec],
            out_specs=o_spec,
        ),
        compiler_params=pltpu.CompilerParams(
            # Steps are independent; on v7x megacore picks them up when the
            # grid has >=2 steps.  A single big tile is preferred for small M
            # (per review) so we deliberately do not force a 2-way split.
            dimension_semantics=("parallel",),
            vmem_limit_bytes=vmem_limit,
        ),
    )(x_packed, w_packed)
    return out[..., :M]


# ----------------------------------------------------------------------------
# Module
# ----------------------------------------------------------------------------
class SpectralConv2dFast:
    """JAX/Pallas port of SpectralConv2d_fast."""

    def __init__(self, in_channels, out_channels, modes1, modes2, key):
        self.in_channels = in_channels
        self.out_channels = out_channels
        self.modes1 = modes1
        self.modes2 = modes2
        scale = 1.0 / (in_channels * out_channels)
        k1, k2, k3, k4 = jax.random.split(key, 4)
        shp = (in_channels, out_channels, modes1, modes2)
        # torch.rand(..., dtype=torch.cfloat): real & imag ~ U[0,1)
        self.weights1 = (scale * jax.random.uniform(k1, shp, jnp.float32)
                         + 1j * scale * jax.random.uniform(k2, shp, jnp.float32)
                         ).astype(jnp.complex64)
        self.weights2 = (scale * jax.random.uniform(k3, shp, jnp.float32)
                         + 1j * scale * jax.random.uniform(k4, shp, jnp.float32)
                         ).astype(jnp.complex64)

        # Kernel-ready weight layout, built once: (2, Cin*Cout, M) float32,
        # row index = i*Cout + o, mode index = row*modes2 + col.
        # (Weights kept f32 everywhere; bf16 storage on v6e/v7x would halve
        #  DMA bytes but changes numerics vs. the reference — left as f32.)
        M = 2 * modes1 * modes2
        w = jnp.concatenate([self.weights1, self.weights2], axis=2)  # (Ci,Co,2m1,m2)
        wm = w.reshape(in_channels * out_channels, M)                # free reshape
        self._w_packed = jnp.stack(
            [jnp.real(wm), jnp.imag(wm)], axis=0).astype(jnp.float32)  # (2,Ci*Co,M)
        self._M = M

    def __call__(self, x):
        # x: (B, Cin, H, W) float32  (NCHW, same as PyTorch)
        B, Cin, H, W = x.shape
        m1, m2 = self.modes1, self.modes2
        Cout = self.out_channels
        M = self._M
        Wf = W // 2 + 1
        assert Cin == self.in_channels
        assert m2 <= Wf, "modes2 exceeds rfft width W//2+1"
        assert 2 * m1 <= H, "2*modes1 exceeds spectrum height H"

        x_ft = jnp.fft.rfft2(x)                          # (B, Cin, H, Wf) complex64

        # Retained modes: top m1 rows and bottom m1 rows, first m2 cols,
        # flattened to (B*Cin, M) with mode index = row*m2 + col.
        top = x_ft[:, :, :m1, :m2]                       # (B, Cin, m1, m2)
        bot = x_ft[:, :, H - m1:, :m2]                   # (B, Cin, m1, m2)
        xm = jnp.concatenate([top, bot], axis=2).reshape(B * Cin, M)
        x_packed = jnp.stack(
            [jnp.real(xm), jnp.imag(xm)], axis=0).astype(jnp.float32)  # (2,B*Cin,M)

        out = _spectral_mul_pallas(x_packed, self._w_packed, B, Cin, Cout)

        out_c = (out[0] + 1j * out[1]).astype(jnp.complex64)
        out_modes = out_c.reshape(B, Cout, 2 * m1, m2)   # free reshape

        # Assemble the full spectrum by pad + concat (no zeros + scatter pass).
        pad_cols = ((0, 0), (0, 0), (0, 0), (0, Wf - m2))
        top_f = jnp.pad(out_modes[:, :, :m1, :], pad_cols)
        bot_f = jnp.pad(out_modes[:, :, m1:, :], pad_cols)
        mid = jnp.zeros((B, Cout, H - 2 * m1, Wf), dtype=jnp.complex64)
        out_ft = jnp.concatenate([top_f, mid, bot_f], axis=2)

        return jnp.fft.irfft2(out_ft, s=(H, W))          # (B, Cout, H, W) float32


def _reference_forward(layer, x):
    """Plain-JAX reference matching the PyTorch forward (for sanity check)."""
    B, Cin, H, W = x.shape
    m1, m2 = layer.modes1, layer.modes2
    x_ft = jnp.fft.rfft2(x)
    out_ft = jnp.zeros((B, layer.out_channels, H, W // 2 + 1), dtype=jnp.complex64)
    mul = lambda a, w: jnp.einsum("bixy,ioxy->boxy", a, w)
    out_ft = out_ft.at[:, :, :m1, :m2].set(mul(x_ft[:, :, :m1, :m2], layer.weights1))
    out_ft = out_ft.at[:, :, H - m1:, :m2].set(mul(x_ft[:, :, H - m1:, :m2], layer.weights2))
    return jnp.fft.irfft2(out_ft, s=(H, W))


if __name__ == "__main__":
    key = jax.random.PRNGKey(0)
    k_w, k_x = jax.random.split(key)

    B, Cin, Cout, H, W = 2, 4, 4, 16, 16
    modes1, modes2 = 4, 4

    layer = SpectralConv2dFast(Cin, Cout, modes1, modes2, k_w)
    x = jax.random.normal(k_x, (B, Cin, H, W), dtype=jnp.float32)

    out = jax.block_until_ready(layer(x))
    ref = jax.block_until_ready(_reference_forward(layer, x))

    assert out.shape == (B, Cout, H, W)
    assert jnp.allclose(out, ref, atol=1e-5, rtol=1e-5)

    print("KERNEL_OK")
</pallas_src>

<mosaic_0001>
module attributes {stable_mosaic.version = 11 : i64} {
  func.func @_spectral_mul_kernel(%arg0: i32, %arg1: memref<2x8x128xf32, #tpu.memory_space<vmem>>, %arg2: memref<2x16x128xf32, #tpu.memory_space<vmem>>, %arg3: memref<2x8x128xf32, #tpu.memory_space<vmem>>) attributes {dimension_semantics = [#tpu.dimension_semantics<parallel>], iteration_bounds = array<i64: 1>, scalar_prefetch = 0 : i64, scratch_operands = 0 : i64, tpu.core_type = #tpu.core_type<tc>, window_params = [{transform_indices = @transform_0, window_bounds = array<i64: 2, 8, 128>}, {transform_indices = @transform_1, window_bounds = array<i64: 2, 16, 128>}, {transform_indices = @transform_2, window_bounds = array<i64: 2, 8, 128>}]} {
    %cst = arith.constant 0.000000e+00 : f32
    %0 = vector.broadcast %cst : f32 to vector<4x128xf32>
    %cst_0 = arith.constant 0.000000e+00 : f32
    %1 = vector.broadcast %cst_0 : f32 to vector<4x128xf32>
    %c0 = arith.constant 0 : index
    %c0_1 = arith.constant 0 : index
    %c0_2 = arith.constant 0 : index
    %2 = vector.load %arg1[%c0, %c0_1, %c0_2] : memref<2x8x128xf32, #tpu.memory_space<vmem>>, vector<1x1x128xf32>
    %3 = vector.shape_cast %2 : vector<1x1x128xf32> to vector<1x128xf32>
    %c1 = arith.constant 1 : index
    %c0_3 = arith.constant 0 : index
    %c0_4 = arith.constant 0 : index
    %4 = vector.load %arg1[%c1, %c0_3, %c0_4] : memref<2x8x128xf32, #tpu.memory_space<vmem>>, vector<1x1x128xf32>
    %5 = vector.shape_cast %4 : vector<1x1x128xf32> to vector<1x128xf32>
    %c0_5 = arith.constant 0 : index
    %c0_6 = arith.constant 0 : index
    %c0_7 = arith.constant 0 : index
    %6 = vector.load %arg2[%c0_5, %c0_6, %c0_7] : memref<2x16x128xf32, #tpu.memory_space<vmem>>, vector<1x4x128xf32>
    %7 = vector.shape_cast %6 : vector<1x4x128xf32> to vector<4x128xf32>
    %c1_8 = arith.constant 1 : index
    %c0_9 = arith.constant 0 : index
    %c0_10 = arith.constant 0 : index
    %8 = vector.load %arg2[%c1_8, %c0_9, %c0_10] : memref<2x16x128xf32, #tpu.memory_space<vmem>>, vector<1x4x128xf32>
    %9 = vector.shape_cast %8 : vector<1x4x128xf32> to vector<4x128xf32>
    %10 = vector.broadcast %3 : vector<1x128xf32> to vector<4x128xf32>
    %11 = arith.mulf %10, %7 : vector<4x128xf32>
    %12 = arith.addf %0, %11 : vector<4x128xf32>
    %13 = vector.broadcast %5 : vector<1x128xf32> to vector<4x128xf32>
    %14 = arith.mulf %13, %9 : vector<4x128xf32>
    %15 = arith.subf %12, %14 : vector<4x128xf32>
    %16 = vector.broadcast %3 : vector<1x128xf32> to vector<4x128xf32>
    %17 = arith.mulf %16, %9 : vector<4x128xf32>
    %18 = arith.addf %1, %17 : vector<4x128xf32>
    %19 = vector.broadcast %5 : vector<1x128xf32> to vector<4x128xf32>
    %20 = arith.mulf %19, %7 : vector<4x128xf32>
    %21 = arith.addf %18, %20 : vector<4x128xf32>
    %c0_11 = arith.constant 0 : index
    %c1_12 = arith.constant 1 : index
    %c0_13 = arith.constant 0 : index
    %22 = vector.load %arg1[%c0_11, %c1_12, %c0_13] : memref<2x8x128xf32, #tpu.memory_space<vmem>>, vector<1x1x128xf32>
    %23 = vector.shape_cast %22 : vector<1x1x128xf32> to vector<1x128xf32>
    %c1_14 = arith.constant 1 : index
    %c1_15 = arith.constant 1 : index
    %c0_16 = arith.constant 0 : index
    %24 = vector.load %arg1[%c1_14, %c1_15, %c0_16] : memref<2x8x128xf32, #tpu.memory_space<vmem>>, vector<1x1x128xf32>
    %25 = vector.shape_cast %24 : vector<1x1x128xf32> to vector<1x128xf32>
    %c0_17 = arith.constant 0 : index
    %c4 = arith.constant 4 : index
    %c0_18 = arith.constant 0 : index
    %26 = vector.load %arg2[%c0_17, %c4, %c0_18] : memref<2x16x128xf32, #tpu.memory_space<vmem>>, vector<1x4x128xf32>
    %27 = vector.shape_cast %26 : vector<1x4x128xf32> to vector<4x128xf32>
    %c1_19 = arith.constant 1 : index
    %c4_20 = arith.constant 4 : index
    %c0_21 = arith.constant 0 : index
    %28 = vector.load %arg2[%c1_19, %c4_20, %c0_21] : memref<2x16x128xf32, #tpu.memory_space<vmem>>, vector<1x4x128xf32>
    %29 = vector.shape_cast %28 : vector<1x4x128xf32> to vector<4x128xf32>
    %30 = vector.broadcast %23 : vector<1x128xf32> to vector<4x128xf32>
    %31 = arith.mulf %30, %27 : vector<4x128xf32>
    %32 = arith.addf %15, %31 : vector<4x128xf32>
    %33 = vector.broadcast %25 : vector<1x128xf32> to vector<4x128xf32>
    %34 = arith.mulf %33, %29 : vector<4x128xf32>
    %35 = arith.subf %32, %34 : vector<4x128xf32>
    %36 = vector.broadcast %23 : vector<1x128xf32> to vector<4x128xf32>
    %37 = arith.mulf %36, %29 : vector<4x128xf32>
    %38 = arith.addf %21, %37 : vector<4x128xf32>
    %39 = vector.broadcast %25 : vector<1x128xf32> to vector<4x128xf32>
    %40 = arith.mulf %39, %27 : vector<4x128xf32>
    %41 = arith.addf %38, %40 : vector<4x128xf32>
    %c0_22 = arith.constant 0 : index
    %c2 = arith.constant 2 : index
    %c0_23 = arith.constant 0 : index
    %42 = vector.load %arg1[%c0_22, %c2, %c0_23] : memref<2x8x128xf32, #tpu.memory_space<vmem>>, vector<1x1x128xf32>
    %43 = vector.shape_cast %42 : vector<1x1x128xf32> to vector<1x128xf32>
    %c1_24 = arith.constant 1 : index
    %c2_25 = arith.constant 2 : index
    %c0_26 = arith.constant 0 : index
    %44 = vector.load %arg1[%c1_24, %c2_25, %c0_26] : memref<2x8x128xf32, #tpu.memory_space<vmem>>, vector<1x1x128xf32>
    %45 = vector.shape_cast %44 : vector<1x1x128xf32> to vector<1x128xf32>
    %c0_27 = arith.constant 0 : index
    %c8 = arith.constant 8 : index
    %c0_28 = arith.constant 0 : index
    %46 = vector.load %arg2[%c0_27, %c8, %c0_28] : memref<2x16x128xf32, #tpu.memory_space<vmem>>, vector<1x4x128xf32>
    %47 = vector.shape_cast %46 : vector<1x4x128xf32> to vector<4x128xf32>
    %c1_29 = arith.constant 1 : index
    %c8_30 = arith.constant 8 : index
    %c0_31 = arith.constant 0 : index
    %48 = vector.load %arg2[%c1_29, %c8_30, %c0_31] : memref<2x16x128xf32, #tpu.memory_space<vmem>>, vector<1x4x128xf32>
    %49 = vector.shape_cast %48 : vector<1x4x128xf32> to vector<4x128xf32>
    %50 = vector.broadcast %43 : vector<1x128xf32> to vector<4x128xf32>
    %51 = arith.mulf %50, %47 : vector<4x128xf32>
    %52 = arith.addf %35, %51 : vector<4x128xf32>
    %53 = vector.broadcast %45 : vector<1x128xf32> to vector<4x128xf32>
    %54 = arith.mulf %53, %49 : vector<4x128xf32>
    %55 = arith.subf %52, %54 : vector<4x128xf32>
    %56 = vector.broadcast %43 : vector<1x128xf32> to vector<4x128xf32>
    %57 = arith.mulf %56, %49 : vector<4x128xf32>
    %58 = arith.addf %41, %57 : vector<4x128xf32>
    %59 = vector.broadcast %45 : vector<1x128xf32> to vector<4x128xf32>
    %60 = arith.mulf %59, %47 : vector<4x128xf32>
    %61 = arith.addf %58, %60 : vector<4x128xf32>
    %c0_32 = arith.constant 0 : index
    %c3 = arith.constant 3 : index
    %c0_33 = arith.constant 0 : index
    %62 = vector.load %arg1[%c0_32, %c3, %c0_33] : memref<2x8x128xf32, #tpu.memory_space<vmem>>, vector<1x1x128xf32>
    %63 = vector.shape_cast %62 : vector<1x1x128xf32> to vector<1x128xf32>
    %c1_34 = arith.constant 1 : index
    %c3_35 = arith.constant 3 : index
    %c0_36 = arith.constant 0 : index
    %64 = vector.load %arg1[%c1_34, %c3_35, %c0_36] : memref<2x8x128xf32, #tpu.memory_space<vmem>>, vector<1x1x128xf32>
    %65 = vector.shape_cast %64 : vector<1x1x128xf32> to vector<1x128xf32>
    %c0_37 = arith.constant 0 : index
    %c12 = arith.constant 12 : index
    %c0_38 = arith.constant 0 : index
    %66 = vector.load %arg2[%c0_37, %c12, %c0_38] : memref<2x16x128xf32, #tpu.memory_space<vmem>>, vector<1x4x128xf32>
    %67 = vector.shape_cast %66 : vector<1x4x128xf32> to vector<4x128xf32>
    %c1_39 = arith.constant 1 : index
    %c12_40 = arith.constant 12 : index
    %c0_41 = arith.constant 0 : index
    %68 = vector.load %arg2[%c1_39, %c12_40, %c0_41] : memref<2x16x128xf32, #tpu.memory_space<vmem>>, vector<1x4x128xf32>
    %69 = vector.shape_cast %68 : vector<1x4x128xf32> to vector<4x128xf32>
    %70 = vector.broadcast %63 : vector<1x128xf32> to vector<4x128xf32>
    %71 = arith.mulf %70, %67 : vector<4x128xf32>
    %72 = arith.addf %55, %71 : vector<4x128xf32>
    %73 = vector.broadcast %65 : vector<1x128xf32> to vector<4x128xf32>
    %74 = arith.mulf %73, %69 : vector<4x128xf32>
    %75 = arith.subf %72, %74 : vector<4x128xf32>
    %76 = vector.broadcast %63 : vector<1x128xf32> to vector<4x128xf32>
    %77 = arith.mulf %76, %69 : vector<4x128xf32>
    %78 = arith.addf %61, %77 : vector<4x128xf32>
    %79 = vector.broadcast %65 : vector<1x128xf32> to vector<4x128xf32>
    %80 = arith.mulf %79, %67 : vector<4x128xf32>
    %81 = arith.addf %78, %80 : vector<4x128xf32>
    %c0_42 = arith.constant 0 : index
    %c0_43 = arith.constant 0 : index
    %c0_44 = arith.constant 0 : index
    %82 = vector.load %arg3[%c0_42, %c0_43, %c0_44] : memref<2x8x128xf32, #tpu.memory_space<vmem>>, vector<1x4x128xf32>
    %83 = vector.shape_cast %82 : vector<1x4x128xf32> to vector<4x128xf32>
    %84 = vector.shape_cast %75 : vector<4x128xf32> to vector<1x4x128xf32>
    tpu.vector_store %arg3[%c0_42, %c0_43, %c0_44], %84 {strides = array<i32>} : memref<2x8x128xf32, #tpu.memory_space<vmem>>, vector<1x4x128xf32>,
    %c1_45 = arith.constant 1 : index
    %c0_46 = arith.constant 0 : index
    %c0_47 = arith.constant 0 : index
    %85 = vector.load %arg3[%c1_45, %c0_46, %c0_47] : memref<2x8x128xf32, #tpu.memory_space<vmem>>, vector<1x4x128xf32>
    %86 = vector.shape_cast %85 : vector<1x4x128xf32> to vector<4x128xf32>
    %87 = vector.shape_cast %81 : vector<4x128xf32> to vector<1x4x128xf32>
    tpu.vector_store %arg3[%c1_45, %c0_46, %c0_47], %87 {strides = array<i32>} : memref<2x8x128xf32, #tpu.memory_space<vmem>>, vector<1x4x128xf32>,
    %cst_48 = arith.constant 0.000000e+00 : f32
    %88 = vector.broadcast %cst_48 : f32 to vector<4x128xf32>
    %cst_49 = arith.constant 0.000000e+00 : f32
    %89 = vector.broadcast %cst_49 : f32 to vector<4x128xf32>
    %c0_50 = arith.constant 0 : index
    %c4_51 = arith.constant 4 : index
    %c0_52 = arith.constant 0 : index
    %90 = vector.load %arg1[%c0_50, %c4_51, %c0_52] : memref<2x8x128xf32, #tpu.memory_space<vmem>>, vector<1x1x128xf32>
    %91 = vector.shape_cast %90 : vector<1x1x128xf32> to vector<1x128xf32>
    %c1_53 = arith.constant 1 : index
    %c4_54 = arith.constant 4 : index
    %c0_55 = arith.constant 0 : index
    %92 = vector.load %arg1[%c1_53, %c4_54, %c0_55] : memref<2x8x128xf32, #tpu.memory_space<vmem>>, vector<1x1x128xf32>
    %93 = vector.shape_cast %92 : vector<1x1x128xf32> to vector<1x128xf32>
    %c0_56 = arith.constant 0 : index
    %c0_57 = arith.constant 0 : index
    %c0_58 = arith.constant 0 : index
    %94 = vector.load %arg2[%c0_56, %c0_57, %c0_58] : memref<2x16x128xf32, #tpu.memory_space<vmem>>, vector<1x4x128xf32>
    %95 = vector.shape_cast %94 : vector<1x4x128xf32> to vector<4x128xf32>
    %c1_59 = arith.constant 1 : index
    %c0_60 = arith.constant 0 : index
    %c0_61 = arith.constant 0 : index
    %96 = vector.load %arg2[%c1_59, %c0_60, %c0_61] : memref<2x16x128xf32, #tpu.memory_space<vmem>>, vector<1x4x128xf32>
    %97 = vector.shape_cast %96 : vector<1x4x128xf32> to vector<4x128xf32>
    %98 = vector.broadcast %91 : vector<1x128xf32> to vector<4x128xf32>
    %99 = arith.mulf %98, %95 : vector<4x128xf32>
    %100 = arith.addf %88, %99 : vector<4x128xf32>
    %101 = vector.broadcast %93 : vector<1x128xf32> to vector<4x128xf32>
    %102 = arith.mulf %101, %97 : vector<4x128xf32>
    %103 = arith.subf %100, %102 : vector<4x128xf32>
    %104 = vector.broadcast %91 : vector<1x128xf32> to vector<4x128xf32>
    %105 = arith.mulf %104, %97 : vector<4x128xf32>
    %106 = arith.addf %89, %105 : vector<4x128xf32>
    %107 = vector.broadcast %93 : vector<1x128xf32> to vector<4x128xf32>
    %108 = arith.mulf %107, %95 : vector<4x128xf32>
    %109 = arith.addf %106, %108 : vector<4x128xf32>
    %c0_62 = arith.constant 0 : index
    %c5 = arith.constant 5 : index
    %c0_63 = arith.constant 0 : index
    %110 = vector.load %arg1[%c0_62, %c5, %c0_63] : memref<2x8x128xf32, #tpu.memory_space<vmem>>, vector<1x1x128xf32>
    %111 = vector.shape_cast %110 : vector<1x1x128xf32> to vector<1x128xf32>
    %c1_64 = arith.constant 1 : index
    %c5_65 = arith.constant 5 : index
    %c0_66 = arith.constant 0 : index
    %112 = vector.load %arg1[%c1_64, %c5_65, %c0_66] : memref<2x8x128xf32, #tpu.memory_space<vmem>>, vector<1x1x128xf32>
    %113 = vector.shape_cast %112 : vector<1x1x128xf32> to vector<1x128xf32>
    %c0_67 = arith.constant 0 : index
    %c4_68 = arith.constant 4 : index
    %c0_69 = arith.constant 0 : index
    %114 = vector.load %arg2[%c0_67, %c4_68, %c0_69] : memref<2x16x128xf32, #tpu.memory_space<vmem>>, vector<1x4x128xf32>
    %115 = vector.shape_cast %114 : vector<1x4x128xf32> to vector<4x128xf32>
    %c1_70 = arith.constant 1 : index
    %c4_71 = arith.constant 4 : index
    %c0_72 = arith.constant 0 : index
    %116 = vector.load %arg2[%c1_70, %c4_71, %c0_72] : memref<2x16x128xf32, #tpu.memory_space<vmem>>, vector<1x4x128xf32>
    %117 = vector.shape_cast %116 : vector<1x4x128xf32> to vector<4x128xf32>
    %118 = vector.broadcast %111 : vector<1x128xf32> to vector<4x128xf32>
    %119 = arith.mulf %118, %115 : vector<4x128xf32>
    %120 = arith.addf %103, %119 : vector<4x128xf32>
    %121 = vector.broadcast %113 : vector<1x128xf32> to vector<4x128xf32>
    %122 = arith.mulf %121, %117 : vector<4x128xf32>
    %123 = arith.subf %120, %122 : vector<4x128xf32>
    %124 = vector.broadcast %111 : vector<1x128xf32> to vector<4x128xf32>
    %125 = arith.mulf %124, %117 : vector<4x128xf32>
    %126 = arith.addf %109, %125 : vector<4x128xf32>
    %127 = vector.broadcast %113 : vector<1x128xf32> to vector<4x128xf32>
    %128 = arith.mulf %127, %115 : vector<4x128xf32>
    %129 = arith.addf %126, %128 : vector<4x128xf32>
    %c0_73 = arith.constant 0 : index
    %c6 = arith.constant 6 : index
    %c0_74 = arith.constant 0 : index
    %130 = vector.load %arg1[%c0_73, %c6, %c0_74] : memref<2x8x128xf32, #tpu.memory_space<vmem>>, vector<1x1x128xf32>
    %131 = vector.shape_cast %130 : vector<1x1x128xf32> to vector<1x128xf32>
    %c1_75 = arith.constant 1 : index
    %c6_76 = arith.constant 6 : index
    %c0_77 = arith.constant 0 : index
    %132 = vector.load %arg1[%c1_75, %c6_76, %c0_77] : memref<2x8x128xf32, #tpu.memory_space<vmem>>, vector<1x1x128xf32>
    %133 = vector.shape_cast %132 : vector<1x1x128xf32> to vector<1x128xf32>
    %c0_78 = arith.constant 0 : index
    %c8_79 = arith.constant 8 : index
    %c0_80 = arith.constant 0 : index
    %134 = vector.load %arg2[%c0_78, %c8_79, %c0_80] : memref<2x16x128xf32, #tpu.memory_space<vmem>>, vector<1x4x128xf32>
    %135 = vector.shape_cast %134 : vector<1x4x128xf32> to vector<4x128xf32>
    %c1_81 = arith.constant 1 : index
    %c8_82 = arith.constant 8 : index
    %c0_83 = arith.constant 0 : index
    %136 = vector.load %arg2[%c1_81, %c8_82, %c0_83] : memref<2x16x128xf32, #tpu.memory_space<vmem>>, vector<1x4x128xf32>
    %137 = vector.shape_cast %136 : vector<1x4x128xf32> to vector<4x128xf32>
    %138 = vector.broadcast %131 : vector<1x128xf32> to vector<4x128xf32>
    %139 = arith.mulf %138, %135 : vector<4x128xf32>
    %140 = arith.addf %123, %139 : vector<4x128xf32>
    %141 = vector.broadcast %133 : vector<1x128xf32> to vector<4x128xf32>
    %142 = arith.mulf %141, %137 : vector<4x128xf32>
    %143 = arith.subf %140, %142 : vector<4x128xf32>
    %144 = vector.broadcast %131 : vector<1x128xf32> to vector<4x128xf32>
    %145 = arith.mulf %144, %137 : vector<4x128xf32>
    %146 = arith.addf %129, %145 : vector<4x128xf32>
    %147 = vector.broadcast %133 : vector<1x128xf32> to vector<4x128xf32>
    %148 = arith.mulf %147, %135 : vector<4x128xf32>
    %149 = arith.addf %146, %148 : vector<4x128xf32>
    %c0_84 = arith.constant 0 : index
    %c7 = arith.constant 7 : index
    %c0_85 = arith.constant 0 : index
    %150 = vector.load %arg1[%c0_84, %c7, %c0_85] : memref<2x8x128xf32, #tpu.memory_space<vmem>>, vector<1x1x128xf32>
    %151 = vector.shape_cast %150 : vector<1x1x128xf32> to vector<1x128xf32>
    %c1_86 = arith.constant 1 : index
    %c7_87 = arith.constant 7 : index
    %c0_88 = arith.constant 0 : index
    %152 = vector.load %arg1[%c1_86, %c7_87, %c0_88] : memref<2x8x128xf32, #tpu.memory_space<vmem>>, vector<1x1x128xf32>
    %153 = vector.shape_cast %152 : vector<1x1x128xf32> to vector<1x128xf32>
    %c0_89 = arith.constant 0 : index
    %c12_90 = arith.constant 12 : index
    %c0_91 = arith.constant 0 : index
    %154 = vector.load %arg2[%c0_89, %c12_90, %c0_91] : memref<2x16x128xf32, #tpu.memory_space<vmem>>, vector<1x4x128xf32>
    %155 = vector.shape_cast %154 : vector<1x4x128xf32> to vector<4x128xf32>
    %c1_92 = arith.constant 1 : index
    %c12_93 = arith.constant 12 : index
    %c0_94 = arith.constant 0 : index
    %156 = vector.load %arg2[%c1_92, %c12_93, %c0_94] : memref<2x16x128xf32, #tpu.memory_space<vmem>>, vector<1x4x128xf32>
    %157 = vector.shape_cast %156 : vector<1x4x128xf32> to vector<4x128xf32>
    %158 = vector.broadcast %151 : vector<1x128xf32> to vector<4x128xf32>
    %159 = arith.mulf %158, %155 : vector<4x128xf32>
    %160 = arith.addf %143, %159 : vector<4x128xf32>
    %161 = vector.broadcast %153 : vector<1x128xf32> to vector<4x128xf32>
    %162 = arith.mulf %161, %157 : vector<4x128xf32>
    %163 = arith.subf %160, %162 : vector<4x128xf32>
    %164 = vector.broadcast %151 : vector<1x128xf32> to vector<4x128xf32>
    %165 = arith.mulf %164, %157 : vector<4x128xf32>
    %166 = arith.addf %149, %165 : vector<4x128xf32>
    %167 = vector.broadcast %153 : vector<1x128xf32> to vector<4x128xf32>
    %168 = arith.mulf %167, %155 : vector<4x128xf32>
    %169 = arith.addf %166, %168 : vector<4x128xf32>
    %c0_95 = arith.constant 0 : index
    %c4_96 = arith.constant 4 : index
    %c0_97 = arith.constant 0 : index
    %170 = vector.load %arg3[%c0_95, %c4_96, %c0_97] : memref<2x8x128xf32, #tpu.memory_space<vmem>>, vector<1x4x128xf32>
    %171 = vector.shape_cast %170 : vector<1x4x128xf32> to vector<4x128xf32>
    %172 = vector.shape_cast %163 : vector<4x128xf32> to vector<1x4x128xf32>
    tpu.vector_store %arg3[%c0_95, %c4_96, %c0_97], %172 {strides = array<i32>} : memref<2x8x128xf32, #tpu.memory_space<vmem>>, vector<1x4x128xf32>,
    %c1_98 = arith.constant 1 : index
    %c4_99 = arith.constant 4 : index
    %c0_100 = arith.constant 0 : index
    %173 = vector.load %arg3[%c1_98, %c4_99, %c0_100] : memref<2x8x128xf32, #tpu.memory_space<vmem>>, vector<1x4x128xf32>
    %174 = vector.shape_cast %173 : vector<1x4x128xf32> to vector<4x128xf32>
    %175 = vector.shape_cast %169 : vector<4x128xf32> to vector<1x4x128xf32>
    tpu.vector_store %arg3[%c1_98, %c4_99, %c0_100], %175 {strides = array<i32>} : memref<2x8x128xf32, #tpu.memory_space<vmem>>, vector<1x4x128xf32>,
    return
  }
  func.func @transform_0(%arg0: i32) -> (i32, i32, i32) {
    %c0_i32 = arith.constant 0 : i32
    %c0_i32_0 = arith.constant 0 : i32
    %c0_i32_1 = arith.constant 0 : i32
    return %c0_i32, %c0_i32_0, %arg0 : i32, i32, i32
  }
  func.func @transform_1(%arg0: i32) -> (i32, i32, i32) {
    %c0_i32 = arith.constant 0 : i32
    %c0_i32_0 = arith.constant 0 : i32
    %c0_i32_1 = arith.constant 0 : i32
    return %c0_i32, %c0_i32_0, %arg0 : i32, i32, i32
  }
  func.func @transform_2(%arg0: i32) -> (i32, i32, i32) {
    %c0_i32 = arith.constant 0 : i32
    %c0_i32_0 = arith.constant 0 : i32
    %c0_i32_1 = arith.constant 0 : i32
    return %c0_i32, %c0_i32_0, %arg0 : i32, i32, i32
  }
}

</mosaic_0001>

<llo_original>
// kernel: tpu_custom_call.1
$region0: #{tpu_custom_call.1}
  #allocation0 [shape = 'u32[]', space=smem, size = 0x4, offset = 0x4, fixed_abs, tag = 'smem constant byte address 0x4 - core index']
  #allocation1 [shape = 'u32[72,128]{1,0:T(1,128)}', space=vmem, size = 0x9000, scoped, tag = 'internal scratch']
  %s0 = inlined_call_operand.hbm [shape: f32[2,8,128], index: 0, kind: input, shape index: {}]
  %s1 = inlined_call_operand.hbm [shape: f32[2,16,128], index: 1, kind: input, shape index: {}]
  %s2 = inlined_call_operand.hbm [shape: f32[2,8,128], index: 2, kind: output, shape index: {}]
  %s3 = sld [smem:[#allocation0]]
  $region26: #{tpu_custom_call.1} parent=0
    _
  %s5 = ssub.s32 1, %s3
  %s6 = scalar_select 0, %s5, %s3
  $region1: #{tpu_custom_call.1} parent=0
    #allocation2 [shape = 'u8[8192]{0}', space=vmem, size = 0x2000, scoped, tag = 'input window, operand 0, single buffered']
    #allocation3 [shape = 's32[1]{0}', space=sflag, size = 0x4, scoped, tag = 'scoped memory for tpu_custom_call.1']
    #allocation4 [shape = 's32[1]{0}', space=sflag, size = 0x4, scoped, tag = 'scoped memory for tpu_custom_call.1']
    #allocation5 [shape = 'u8[16384]{0}', space=vmem, size = 0x4000, scoped, tag = 'input window, operand 1, single buffered']
    #allocation6 [shape = 's32[1]{0}', space=sflag, size = 0x4, scoped, tag = 'scoped memory for tpu_custom_call.1']
    #allocation7 [shape = 'u8[8192]{0}', space=vmem, size = 0x2000, scoped, tag = 'output window, operand 0, single buffered']
    %7 = vsyncpa [#allocation3], 0
    %8 = vsyncpa [#allocation6], 0
    %9 = vsyncpa [#allocation4], 0
    // Predicated region
    $region2: #{tpu_custom_call.1} parent=1 // pred_check
      _
    $region3: #{tpu_custom_call.1} parent=1 // pred_check_branch
      %11 = sbr.rel (0) target = $region5
    $region4: #{tpu_custom_call.1} parent=1 // pred_region
      %13 = vsyncadd [#allocation3], 0
      %s14 = sshll.u32 %s0, 4
      %s15 = int_to_ptr.hbm [resolvable:$true] %s14
      %s16 = sshll.u32 [#allocation2], 4
      %s17 = int_to_ptr.vmem [resolvable:$true] %s16
      %22 = dma.hbm_to_vmem [thread:$0]  %s15, 256, %s17, [#allocation3], 128, 128, 8
    $region5: #{tpu_custom_call.1} parent=1 // pred_fallthru
      _
    // Predicated region
    $region6: #{tpu_custom_call.1} parent=1 // pred_check
      _
    $region7: #{tpu_custom_call.1} parent=1 // pred_check_branch
      %24 = sbr.rel (0) target = $region9
    $region8: #{tpu_custom_call.1} parent=1 // pred_region
      %26 = vsyncadd [#allocation6], 0
      %s27 = sshll.u32 %s1, 4
      %s28 = int_to_ptr.hbm [resolvable:$true] %s27
      %s29 = sshll.u32 [#allocation5], 4
      %s30 = int_to_ptr.vmem [resolvable:$true] %s29
      %35 = dma.hbm_to_vmem [thread:$0]  %s28, 512, %s30, [#allocation6], 128, 128, 8
    $region9: #{tpu_custom_call.1} parent=1 // pred_fallthru
      _
    // Predicated region
    $region10: #{tpu_custom_call.1} parent=1 // pred_check
      _
    $region11: #{tpu_custom_call.1} parent=1 // pred_check_branch
      %37 = sbr.rel (0) target = $region13
    $region12: #{tpu_custom_call.1} parent=1 // pred_region
      %39 = dma.done [#allocation3], 256
    $region13: #{tpu_custom_call.1} parent=1 // pred_fallthru
      _
    // Predicated region
    $region14: #{tpu_custom_call.1} parent=1 // pred_check
      _
    $region15: #{tpu_custom_call.1} parent=1 // pred_check_branch
      %41 = sbr.rel (0) target = $region17
    $region16: #{tpu_custom_call.1} parent=1 // pred_region
      %43 = dma.done [#allocation6], 512
    $region17: #{tpu_custom_call.1} parent=1 // pred_fallthru
      _
    %v44 = vld [vmem:[#allocation2] sm:$0x1]
    %s45 = scalar_lea.vmem [#allocation2], 8
    %v46 = vld [vmem:[%s45] sm:$0x1]
    %v47 = vld [vmem:[#allocation5] sm:$0xf]
    %s48 = scalar_lea.vmem [#allocation5], 16
    %v49 = vld [vmem:[%s48] sm:$0xf]
    %v50 = vperm.slane %v44, 0
    %v51 = vmul.f32 %v50, %v47
    %v52 = vadd.f32 %v51, 0.0
    %v53 = vperm.slane %v46, 0
    %v54 = vmul.f32 %v53, %v49
    %v55 = vsub.f32 %v52, %v54
    %v56 = vmul.f32 %v50, %v49
    %v57 = vadd.f32 %v56, 0.0
    %v58 = vmul.f32 %v53, %v47
    %v59 = vadd.f32 %v57, %v58
    %v60 = vld [vmem:[#allocation2 + $0x1] sm:$0x1]
    %v61 = vld [vmem:[%s45 + $0x1] sm:$0x1]
    %v62 = vld [vmem:[#allocation5 + $0x4] sm:$0xf]
    %v63 = vld [vmem:[%s48 + $0x4] sm:$0xf]
    %v64 = vperm.slane %v60, 0
    %v65 = vmul.f32 %v64, %v62
    %v66 = vadd.f32 %v55, %v65
    %v67 = vperm.slane %v61, 0
    %v68 = vmul.f32 %v67, %v63
    %v69 = vsub.f32 %v66, %v68
    %v70 = vmul.f32 %v64, %v63
    %v71 = vadd.f32 %v59, %v70
    %v72 = vmul.f32 %v67, %v62
    %v73 = vadd.f32 %v71, %v72
    %v74 = vld [vmem:[#allocation2 + $0x2] sm:$0x1]
    %v75 = vld [vmem:[%s45 + $0x2] sm:$0x1]
    %v76 = vld [vmem:[#allocation5 + $0x8] sm:$0xf]
    %v77 = vld [vmem:[%s48 + $0x8] sm:$0xf]
    %v78 = vperm.slane %v74, 0
    %v79 = vmul.f32 %v78, %v76
    %v80 = vadd.f32 %v69, %v79
    %v81 = vperm.slane %v75, 0
    %v82 = vmul.f32 %v81, %v77
    %v83 = vsub.f32 %v80, %v82
    %v84 = vmul.f32 %v78, %v77
    %v85 = vadd.f32 %v73, %v84
    %v86 = vmul.f32 %v81, %v76
    %v87 = vadd.f32 %v85, %v86
    %v88 = vld [vmem:[#allocation2 + $0x3] sm:$0x1]
    %v89 = vld [vmem:[%s45 + $0x3] sm:$0x1]
    %v90 = vld [vmem:[#allocation5 + $0xc] sm:$0xf]
    %v91 = vld [vmem:[%s48 + $0xc] sm:$0xf]
    %v92 = vperm.slane %v88, 0
    %v93 = vmul.f32 %v92, %v90
    %v94 = vadd.f32 %v83, %v93
    %v95 = vperm.slane %v89, 0
    %v96 = vmul.f32 %v95, %v91
    %v97 = vsub.f32 %v94, %v96
    %v98 = vmul.f32 %v92, %v91
    %v99 = vadd.f32 %v87, %v98
    %v100 = vmul.f32 %v95, %v90
    %v101 = vadd.f32 %v99, %v100
    %102 = vst [vmem:[#allocation7] sm:$0xf] %v97
    %s103 = scalar_lea.vmem [#allocation7], 8
    %104 = vst [vmem:[%s103] sm:$0xf] %v101
    %v105 = vld [vmem:[#allocation2 + $0x4] sm:$0x1]
    %v106 = vld [vmem:[%s45 + $0x4] sm:$0x1]
    %v107 = vld [vmem:[#allocation5] sm:$0xf]
    %v108 = vld [vmem:[%s48] sm:$0xf]
    %v109 = vperm.slane %v105, 0
    %v110 = vmul.f32 %v109, %v107
    %v111 = vadd.f32 %v110, 0.0
    %v112 = vperm.slane %v106, 0
    %v113 = vmul.f32 %v112, %v108
    %v114 = vsub.f32 %v111, %v113
    %v115 = vmul.f32 %v109, %v108
    %v116 = vadd.f32 %v115, 0.0
    %v117 = vmul.f32 %v112, %v107
    %v118 = vadd.f32 %v116, %v117
    %v119 = vld [vmem:[#allocation2 + $0x5] sm:$0x1]
    %v120 = vld [vmem:[%s45 + $0x5] sm:$0x1]
    %v121 = vld [vmem:[#allocation5 + $0x4] sm:$0xf]
    %v122 = vld [vmem:[%s48 + $0x4] sm:$0xf]
    %v123 = vperm.slane %v119, 0
    %v124 = vmul.f32 %v123, %v121
    %v125 = vadd.f32 %v114, %v124
    %v126 = vperm.slane %v120, 0
    %v127 = vmul.f32 %v126, %v122
    %v128 = vsub.f32 %v125, %v127
    %v129 = vmul.f32 %v123, %v122
    %v130 = vadd.f32 %v118, %v129
    %v131 = vmul.f32 %v126, %v121
    %v132 = vadd.f32 %v130, %v131
    %v133 = vld [vmem:[#allocation2 + $0x6] sm:$0x1]
    %v134 = vld [vmem:[%s45 + $0x6] sm:$0x1]
    %v135 = vld [vmem:[#allocation5 + $0x8] sm:$0xf]
    %v136 = vld [vmem:[%s48 + $0x8] sm:$0xf]
    %v137 = vperm.slane %v133, 0
    %v138 = vmul.f32 %v137, %v135
    %v139 = vadd.f32 %v128, %v138
    %v140 = vperm.slane %v134, 0
    %v141 = vmul.f32 %v140, %v136
    %v142 = vsub.f32 %v139, %v141
    %v143 = vmul.f32 %v137, %v136
    %v144 = vadd.f32 %v132, %v143
    %v145 = vmul.f32 %v140, %v135
    %v146 = vadd.f32 %v144, %v145
    %v147 = vld [vmem:[#allocation2 + $0x7] sm:$0x1]
    %v148 = vld [vmem:[%s45 + $0x7] sm:$0x1]
    %v149 = vld [vmem:[#allocation5 + $0xc] sm:$0xf]
    %v150 = vld [vmem:[%s48 + $0xc] sm:$0xf]
    %v151 = vperm.slane %v147, 0
    %v152 = vmul.f32 %v151, %v149
    %v153 = vadd.f32 %v142, %v152
    %v154 = vperm.slane %v148, 0
    %v155 = vmul.f32 %v154, %v150
    %v156 = vsub.f32 %v153, %v155
    %v157 = vmul.f32 %v151, %v150
    %v158 = vadd.f32 %v146, %v157
    %v159 = vmul.f32 %v154, %v149
    %v160 = vadd.f32 %v158, %v159
    %161 = vst [vmem:[#allocation7 + $0x4] sm:$0xf] %v156
    %162 = vst [vmem:[%s103 + $0x4] sm:$0xf] %v160
    // Predicated region
    $region18: #{tpu_custom_call.1} parent=1 // pred_check
      _
    $region19: #{tpu_custom_call.1} parent=1 // pred_check_branch
      %164 = sbr.rel (0) target = $region21
    $region20: #{tpu_custom_call.1} parent=1 // pred_region
      %166 = vsyncadd [#allocation4], 0
      %s167 = sshll.u32 [#allocation7], 4
      %s168 = int_to_ptr.vmem [resolvable:$true] %s167
      %s169 = sshll.u32 %s2, 4
      %s170 = int_to_ptr.hbm [resolvable:$true] %s169
      %175 = dma.vmem_to_hbm [thread:$0]  %s168, 256, %s170, [#allocation4], 128, 128, 8
    $region21: #{tpu_custom_call.1} parent=1 // pred_fallthru
      _
    // Predicated region
    $region22: #{tpu_custom_call.1} parent=1 // pred_check
      _
    $region23: #{tpu_custom_call.1} parent=1 // pred_check_branch
      %177 = sbr.rel (0) target = $region25
    $region24: #{tpu_custom_call.1} parent=1 // pred_region
      %179 = dma.done [#allocation4], 256
    $region25: #{tpu_custom_call.1} parent=1 // pred_fallthru
      _
    %180 = vsyncpa [#allocation3], 1
    %181 = vsyncpa [#allocation6], 1
    %182 = vsyncpa [#allocation4], 1

</llo_original>
